<compile_context>
chip_gen: v6e
topology: v6e:2x2x1
jax: 0.10.0
libtpu: 0.0.40
codegen_flags: <defaults>
</compile_context>

<pallas_src>
import functools

import jax
import jax.numpy as jnp
import numpy as np
from jax import lax
from jax.experimental import pallas as pl
from jax.experimental.pallas import tpu as pltpu

EPS = 1e-5  # nn.InstanceNorm2d default


# ---------------------------------------------------------------------------
# Kernel
# ---------------------------------------------------------------------------
def _conv3x3_inorm(x2d, w_stacked, masks, *, W):
    """3x3 conv (padding=1) + non-affine InstanceNorm on one (Cin, HW) image.

    x2d:       (Cin, HW)      activation, channel-first, HW on the lane axis.
    w_stacked: (Cout, 9*Cin)  weights, column index = tap*Cin + cin,
                              tap = (ky)*3 + (kx).
    masks:     (9, HW)        1.0 where the shifted source pixel is in-image.
    Returns (Cout, HW) f32, normalized per channel over the spatial axis.
    """
    hw = x2d.shape[-1]
    m = masks.astype(x2d.dtype)

    # Build all 9 taps with XLU lane rotations and stack them tap-major so the
    # whole conv is a single K = 9*Cin MXU dot (no per-tap accumulate chain).
    parts = []
    for k in range(9):  # static unroll
        dy, dx = k // 3 - 1, k % 3 - 1
        s = dy * W + dx  # flat spatial shift of this tap
        if s == 0:
            parts.append(x2d)  # center tap: no shift, always valid
        else:
            # t[p] = x2d[p + s] (circular); wrapped / out-of-image sources are
            # zeroed by the precomputed border mask.
            parts.append(pltpu.roll(x2d, shift=(-s) % hw, axis=1) * m[k:k + 1, :])
    taps = jnp.concatenate(parts, axis=0)            # (9*Cin, HW)

    y = jnp.dot(w_stacked, taps.astype(w_stacked.dtype),
                preferred_element_type=jnp.float32)  # (Cout, HW) f32

    # InstanceNorm2d (no affine): per-channel spatial mean / biased variance,
    # one pass (sum + sum-of-squares), variance clamped to avoid cancellation
    # going negative -> NaN in rsqrt.
    inv_hw = 1.0 / hw
    mean = jnp.sum(y, axis=1, keepdims=True) * inv_hw
    ex2 = jnp.sum(y * y, axis=1, keepdims=True) * inv_hw
    var = jnp.maximum(ex2 - mean * mean, 0.0)
    return (y - mean) * lax.rsqrt(var + EPS)


def resblock_kernel(x_ref, w1_ref, w2_ref, masks_ref, o_ref, *, W):
    """relu(IN(conv2(relu(IN(conv1(x))))) + x), fused, B_TILE images per step."""
    w1 = w1_ref[...]        # (Cout, 9*Cin)
    w2 = w2_ref[...]        # (Cout, 9*Cout)
    masks = masks_ref[...]  # (9, HW)

    b_tile = x_ref.shape[0]
    for b in range(b_tile):  # static unroll over the per-step batch tile
        x = x_ref[b]         # (Cin, HW), lane-dense
        h1 = jnp.maximum(_conv3x3_inorm(x, w1, masks, W=W), 0.0)   # stays in VMEM
        h2 = _conv3x3_inorm(h1, w2, masks, W=W)
        o_ref[b] = jnp.maximum(h2 + x.astype(jnp.float32), 0.0).astype(o_ref.dtype)


# ---------------------------------------------------------------------------
# Host-side helpers (layout plumbing only)
# ---------------------------------------------------------------------------
def _tap_masks(h, w):
    """(9, H*W) f32 masks: 1.0 where the tap's source pixel lies inside."""
    ys, xs = np.meshgrid(np.arange(h), np.arange(w), indexing="ij")
    rows = []
    for dy in (-1, 0, 1):
        for dx in (-1, 0, 1):
            valid = ((ys + dy >= 0) & (ys + dy < h) &
                     (xs + dx >= 0) & (xs + dx < w))
            rows.append(valid.reshape(h * w))
    return jnp.asarray(np.stack(rows).astype(np.float32))


def _stack_weights(w_oihw, compute_dtype):
    """OIHW (Cout, Cin, 3, 3) -> (Cout, 9*Cin); column = (ky*3+kx)*Cin + cin."""
    cout, cin = w_oihw.shape[0], w_oihw.shape[1]
    return (jnp.transpose(w_oihw, (0, 2, 3, 1))
            .reshape(cout, 9 * cin).astype(compute_dtype))


def _pick_batch_tile(n, max_tile=8):
    """Batch several images per grid step (amortize per-step overhead, help
    small-C sublane fill) while keeping >= 2 grid steps for larger N so the
    'parallel' batch axis can shard across v7x's two TensorCores."""
    if n <= 2:
        return n
    for t in range(min(n, max_tile), 0, -1):
        if n % t == 0 and n // t >= 2:
            return t
    return 1


def _vmem_limit_bytes():
    """~3/4 of physical VMEM: ~48 MiB on v7x (64 MiB), ~96 MiB on v5e/v6e."""
    cap = 128 * 1024 * 1024
    try:
        info = pltpu.get_tpu_info()
        cap = int(getattr(info, "vmem_capacity_bytes", cap) or cap)
    except Exception:
        pass
    return int(min(cap * 3 // 4, 112 * 1024 * 1024))


def residual_block(x_nchw, w1, b1, w2, b2, *, compute_dtype=jnp.float32):
    """x_nchw: (N, C, H, W); w1, w2 in PyTorch OIHW layout; b1, b2: (C,).

    b1/b2 are accepted for interface parity but unused: a per-channel conv
    bias is exactly cancelled by the following non-affine InstanceNorm.
    compute_dtype: dtype of activations/weights fed to the MXU dots
    (accumulation is always f32; InstanceNorm math is always f32).  Use
    jnp.bfloat16 for production channel counts.
    """
    del b1, b2
    n, cin, h, w = x_nchw.shape
    cout = w1.shape[0]
    assert cin == cout, "residual add requires in_channels == out_channels"
    hw = h * w  # lane-dense (multiple of 128 here)

    b_tile = _pick_batch_tile(n)
    assert n % b_tile == 0

    x_flat = x_nchw.reshape(n, cin, hw).astype(compute_dtype)
    w1s = _stack_weights(w1, compute_dtype)   # (Cout, 9*Cin)
    w2s = _stack_weights(w2, compute_dtype)   # (Cout, 9*Cout)
    masks = _tap_masks(h, w)                  # (9, HW) f32

    out = pl.pallas_call(
        functools.partial(resblock_kernel, W=w),
        out_shape=jax.ShapeDtypeStruct((n, cout, hw), jnp.float32),
        grid_spec=pltpu.PrefetchScalarGridSpec(
            num_scalar_prefetch=0,
            grid=(n // b_tile,),  # B_TILE images per grid step
            in_specs=[
                pl.BlockSpec((b_tile, cin, hw), lambda i: (i, 0, 0)),
                pl.BlockSpec((cout, 9 * cin), lambda i: (0, 0)),
                pl.BlockSpec((cout, 9 * cout), lambda i: (0, 0)),
                pl.BlockSpec((9, hw), lambda i: (0, 0)),
            ],
            out_specs=pl.BlockSpec((b_tile, cout, hw), lambda i: (i, 0, 0)),
        ),
        compiler_params=pltpu.CompilerParams(
            dimension_semantics=("parallel",),
            vmem_limit_bytes=_vmem_limit_bytes(),
        ),
    )(x_flat, w1s, w2s, masks)
    return out.reshape(n, cout, h, w)


# ---------------------------------------------------------------------------
# Pure-JAX reference (for correctness check)
# ---------------------------------------------------------------------------
def residual_block_reference(x, w1, b1, w2, b2):
    def conv(z, wgt, bias):
        y = lax.conv_general_dilated(
            z, wgt, window_strides=(1, 1), padding=((1, 1), (1, 1)),
            dimension_numbers=("NCHW", "OIHW", "NCHW"))
        return y + bias[None, :, None, None]

    def inorm(z):
        m = jnp.mean(z, axis=(2, 3), keepdims=True)
        v = jnp.mean((z - m) ** 2, axis=(2, 3), keepdims=True)
        return (z - m) / jnp.sqrt(v + EPS)

    out = jnp.maximum(inorm(conv(x, w1, b1)), 0.0)
    out = inorm(conv(out, w2, b2)) + x
    return jnp.maximum(out, 0.0)


# ---------------------------------------------------------------------------
if __name__ == "__main__":
    key = jax.random.PRNGKey(0)
    k1, k2, k3, k4, k5 = jax.random.split(key, 5)

    N, C, H, W = 2, 4, 16, 16  # in_channels == out_channels == 4
    x = jax.random.normal(k1, (N, C, H, W), jnp.float32)
    w1 = jax.random.normal(k2, (C, C, 3, 3), jnp.float32) * 0.2
    b1 = jax.random.normal(k3, (C,), jnp.float32) * 0.1
    w2 = jax.random.normal(k4, (C, C, 3, 3), jnp.float32) * 0.2
    b2 = jax.random.normal(k5, (C,), jnp.float32) * 0.1

    out = jax.block_until_ready(residual_block(x, w1, b1, w2, b2))

    ref = residual_block_reference(x, w1, b1, w2, b2)
    assert out.shape == ref.shape == (N, C, H, W)
    assert jnp.allclose(out, ref, atol=1e-3, rtol=1e-3), float(
        jnp.max(jnp.abs(out - ref)))

    print("KERNEL_OK")
</pallas_src>

<mosaic_0001>
module attributes {stable_mosaic.version = 11 : i64} {
  func.func @resblock_kernel(%arg0: i32, %arg1: memref<2x4x256xf32, #tpu.memory_space<vmem>>, %arg2: memref<4x36xf32, #tpu.memory_space<vmem>>, %arg3: memref<4x36xf32, #tpu.memory_space<vmem>>, %arg4: memref<9x256xf32, #tpu.memory_space<vmem>>, %arg5: memref<2x4x256xf32, #tpu.memory_space<vmem>>) attributes {dimension_semantics = [#tpu.dimension_semantics<parallel>], iteration_bounds = array<i64: 1>, scalar_prefetch = 0 : i64, scratch_operands = 0 : i64, tpu.core_type = #tpu.core_type<tc>, window_params = [{transform_indices = @transform_0, window_bounds = array<i64: 2, 4, 256>}, {pipeline_mode = #tpu.pipeline_mode<synchronous>, transform_indices = @transform_1, window_bounds = array<i64: 4, 36>}, {pipeline_mode = #tpu.pipeline_mode<synchronous>, transform_indices = @transform_2, window_bounds = array<i64: 4, 36>}, {pipeline_mode = #tpu.pipeline_mode<synchronous>, transform_indices = @transform_3, window_bounds = array<i64: 9, 256>}, {transform_indices = @transform_4, window_bounds = array<i64: 2, 4, 256>}]} {
    %c0 = arith.constant 0 : index
    %c0_0 = arith.constant 0 : index
    %0 = vector.load %arg2[%c0, %c0_0] : memref<4x36xf32, #tpu.memory_space<vmem>>, vector<4x36xf32>
    %c0_1 = arith.constant 0 : index
    %c0_2 = arith.constant 0 : index
    %1 = vector.load %arg3[%c0_1, %c0_2] : memref<4x36xf32, #tpu.memory_space<vmem>>, vector<4x36xf32>
    %c0_3 = arith.constant 0 : index
    %c0_4 = arith.constant 0 : index
    %2 = vector.load %arg4[%c0_3, %c0_4] : memref<9x256xf32, #tpu.memory_space<vmem>>, vector<9x256xf32>
    %c0_5 = arith.constant 0 : index
    %c0_6 = arith.constant 0 : index
    %c0_7 = arith.constant 0 : index
    %3 = vector.load %arg1[%c0_5, %c0_6, %c0_7] : memref<2x4x256xf32, #tpu.memory_space<vmem>>, vector<1x4x256xf32>
    %4 = vector.shape_cast %3 : vector<1x4x256xf32> to vector<4x256xf32>
    %c17_i32 = arith.constant 17 : i32
    %5 = tpu.dynamic_rotate %4 by %c17_i32 dim 1 : vector<4x256xf32>, i32 -> vector<4x256xf32>
    %6 = vector.extract_strided_slice %2 {offsets = [0, 0], sizes = [1, 256], strides = [1, 1]} : vector<9x256xf32> to vector<1x256xf32>
    %7 = vector.broadcast %6 : vector<1x256xf32> to vector<4x256xf32>
    %8 = arith.mulf %5, %7 : vector<4x256xf32>
    %c16_i32 = arith.constant 16 : i32
    %9 = tpu.dynamic_rotate %4 by %c16_i32 dim 1 : vector<4x256xf32>, i32 -> vector<4x256xf32>
    %10 = vector.extract_strided_slice %2 {offsets = [1, 0], sizes = [1, 256], strides = [1, 1]} : vector<9x256xf32> to vector<1x256xf32>
    %11 = vector.broadcast %10 : vector<1x256xf32> to vector<4x256xf32>
    %12 = arith.mulf %9, %11 : vector<4x256xf32>
    %c15_i32 = arith.constant 15 : i32
    %13 = tpu.dynamic_rotate %4 by %c15_i32 dim 1 : vector<4x256xf32>, i32 -> vector<4x256xf32>
    %14 = vector.extract_strided_slice %2 {offsets = [2, 0], sizes = [1, 256], strides = [1, 1]} : vector<9x256xf32> to vector<1x256xf32>
    %15 = vector.broadcast %14 : vector<1x256xf32> to vector<4x256xf32>
    %16 = arith.mulf %13, %15 : vector<4x256xf32>
    %c1_i32 = arith.constant 1 : i32
    %17 = tpu.dynamic_rotate %4 by %c1_i32 dim 1 : vector<4x256xf32>, i32 -> vector<4x256xf32>
    %18 = vector.extract_strided_slice %2 {offsets = [3, 0], sizes = [1, 256], strides = [1, 1]} : vector<9x256xf32> to vector<1x256xf32>
    %19 = vector.broadcast %18 : vector<1x256xf32> to vector<4x256xf32>
    %20 = arith.mulf %17, %19 : vector<4x256xf32>
    %c255_i32 = arith.constant 255 : i32
    %21 = tpu.dynamic_rotate %4 by %c255_i32 dim 1 : vector<4x256xf32>, i32 -> vector<4x256xf32>
    %22 = vector.extract_strided_slice %2 {offsets = [5, 0], sizes = [1, 256], strides = [1, 1]} : vector<9x256xf32> to vector<1x256xf32>
    %23 = vector.broadcast %22 : vector<1x256xf32> to vector<4x256xf32>
    %24 = arith.mulf %21, %23 : vector<4x256xf32>
    %c241_i32 = arith.constant 241 : i32
    %25 = tpu.dynamic_rotate %4 by %c241_i32 dim 1 : vector<4x256xf32>, i32 -> vector<4x256xf32>
    %26 = vector.extract_strided_slice %2 {offsets = [6, 0], sizes = [1, 256], strides = [1, 1]} : vector<9x256xf32> to vector<1x256xf32>
    %27 = vector.broadcast %26 : vector<1x256xf32> to vector<4x256xf32>
    %28 = arith.mulf %25, %27 : vector<4x256xf32>
    %c240_i32 = arith.constant 240 : i32
    %29 = tpu.dynamic_rotate %4 by %c240_i32 dim 1 : vector<4x256xf32>, i32 -> vector<4x256xf32>
    %30 = vector.extract_strided_slice %2 {offsets = [7, 0], sizes = [1, 256], strides = [1, 1]} : vector<9x256xf32> to vector<1x256xf32>
    %31 = vector.broadcast %30 : vector<1x256xf32> to vector<4x256xf32>
    %32 = arith.mulf %29, %31 : vector<4x256xf32>
    %c239_i32 = arith.constant 239 : i32
    %33 = tpu.dynamic_rotate %4 by %c239_i32 dim 1 : vector<4x256xf32>, i32 -> vector<4x256xf32>
    %34 = vector.extract_strided_slice %2 {offsets = [8, 0], sizes = [1, 256], strides = [1, 1]} : vector<9x256xf32> to vector<1x256xf32>
    %35 = vector.broadcast %34 : vector<1x256xf32> to vector<4x256xf32>
    %36 = arith.mulf %33, %35 : vector<4x256xf32>
    %37 = tpu.concatenate %8, %12, %16, %20, %4, %24, %28, %32, %36 in 0 : vector<4x256xf32>, vector<4x256xf32>, vector<4x256xf32>, vector<4x256xf32>, vector<4x256xf32>, vector<4x256xf32>, vector<4x256xf32>, vector<4x256xf32>, vector<4x256xf32> -> vector<36x256xf32>
    %cst = arith.constant dense<0.000000e+00> : vector<4x256xf32>
    %38 = tpu.matmul %0, %37, %cst {dimension_numbers = #tpu.dot_dimension_numbers<[1], [0], [0], [1], [0, 0, 1, 1], [], []>} : vector<4x36xf32>, vector<36x256xf32>, vector<4x256xf32> -> vector<4x256xf32>
    %cst_8 = arith.constant dense<0.000000e+00> : vector<4xf32>
    %39 = vector.multi_reduction <add>, %38, %cst_8 [1] : vector<4x256xf32> to vector<4xf32>
    %40 = vector.shape_cast %39 : vector<4xf32> to vector<4x1xf32>
    %cst_9 = arith.constant 3.906250e-03 : f32
    %41 = vector.broadcast %cst_9 : f32 to vector<4x1xf32>
    %42 = arith.mulf %40, %41 : vector<4x1xf32>
    %43 = arith.mulf %38, %38 : vector<4x256xf32>
    %cst_10 = arith.constant dense<0.000000e+00> : vector<4xf32>
    %44 = vector.multi_reduction <add>, %43, %cst_10 [1] : vector<4x256xf32> to vector<4xf32>
    %45 = vector.shape_cast %44 : vector<4xf32> to vector<4x1xf32>
    %cst_11 = arith.constant 3.906250e-03 : f32
    %46 = vector.broadcast %cst_11 : f32 to vector<4x1xf32>
    %47 = arith.mulf %45, %46 : vector<4x1xf32>
    %48 = arith.mulf %42, %42 : vector<4x1xf32>
    %49 = arith.subf %47, %48 : vector<4x1xf32>
    %cst_12 = arith.constant 0.000000e+00 : f32
    %50 = vector.broadcast %cst_12 : f32 to vector<4x1xf32>
    %51 = arith.maximumf %49, %50 : vector<4x1xf32>
    %52 = vector.broadcast %42 : vector<4x1xf32> to vector<4x256xf32>
    %53 = arith.subf %38, %52 : vector<4x256xf32>
    %cst_13 = arith.constant 9.99999974E-6 : f32
    %54 = vector.broadcast %cst_13 : f32 to vector<4x1xf32>
    %55 = arith.addf %51, %54 : vector<4x1xf32>
    %56 = math.rsqrt %55 : vector<4x1xf32>
    %57 = vector.broadcast %56 : vector<4x1xf32> to vector<4x256xf32>
    %58 = arith.mulf %53, %57 : vector<4x256xf32>
    %cst_14 = arith.constant 0.000000e+00 : f32
    %59 = vector.broadcast %cst_14 : f32 to vector<4x256xf32>
    %60 = arith.maximumf %58, %59 : vector<4x256xf32>
    %c17_i32_15 = arith.constant 17 : i32
    %61 = tpu.dynamic_rotate %60 by %c17_i32_15 dim 1 : vector<4x256xf32>, i32 -> vector<4x256xf32>
    %62 = vector.extract_strided_slice %2 {offsets = [0, 0], sizes = [1, 256], strides = [1, 1]} : vector<9x256xf32> to vector<1x256xf32>
    %63 = vector.broadcast %62 : vector<1x256xf32> to vector<4x256xf32>
    %64 = arith.mulf %61, %63 : vector<4x256xf32>
    %c16_i32_16 = arith.constant 16 : i32
    %65 = tpu.dynamic_rotate %60 by %c16_i32_16 dim 1 : vector<4x256xf32>, i32 -> vector<4x256xf32>
    %66 = vector.extract_strided_slice %2 {offsets = [1, 0], sizes = [1, 256], strides = [1, 1]} : vector<9x256xf32> to vector<1x256xf32>
    %67 = vector.broadcast %66 : vector<1x256xf32> to vector<4x256xf32>
    %68 = arith.mulf %65, %67 : vector<4x256xf32>
    %c15_i32_17 = arith.constant 15 : i32
    %69 = tpu.dynamic_rotate %60 by %c15_i32_17 dim 1 : vector<4x256xf32>, i32 -> vector<4x256xf32>
    %70 = vector.extract_strided_slice %2 {offsets = [2, 0], sizes = [1, 256], strides = [1, 1]} : vector<9x256xf32> to vector<1x256xf32>
    %71 = vector.broadcast %70 : vector<1x256xf32> to vector<4x256xf32>
    %72 = arith.mulf %69, %71 : vector<4x256xf32>
    %c1_i32_18 = arith.constant 1 : i32
    %73 = tpu.dynamic_rotate %60 by %c1_i32_18 dim 1 : vector<4x256xf32>, i32 -> vector<4x256xf32>
    %74 = vector.extract_strided_slice %2 {offsets = [3, 0], sizes = [1, 256], strides = [1, 1]} : vector<9x256xf32> to vector<1x256xf32>
    %75 = vector.broadcast %74 : vector<1x256xf32> to vector<4x256xf32>
    %76 = arith.mulf %73, %75 : vector<4x256xf32>
    %c255_i32_19 = arith.constant 255 : i32
    %77 = tpu.dynamic_rotate %60 by %c255_i32_19 dim 1 : vector<4x256xf32>, i32 -> vector<4x256xf32>
    %78 = vector.extract_strided_slice %2 {offsets = [5, 0], sizes = [1, 256], strides = [1, 1]} : vector<9x256xf32> to vector<1x256xf32>
    %79 = vector.broadcast %78 : vector<1x256xf32> to vector<4x256xf32>
    %80 = arith.mulf %77, %79 : vector<4x256xf32>
    %c241_i32_20 = arith.constant 241 : i32
    %81 = tpu.dynamic_rotate %60 by %c241_i32_20 dim 1 : vector<4x256xf32>, i32 -> vector<4x256xf32>
    %82 = vector.extract_strided_slice %2 {offsets = [6, 0], sizes = [1, 256], strides = [1, 1]} : vector<9x256xf32> to vector<1x256xf32>
    %83 = vector.broadcast %82 : vector<1x256xf32> to vector<4x256xf32>
    %84 = arith.mulf %81, %83 : vector<4x256xf32>
    %c240_i32_21 = arith.constant 240 : i32
    %85 = tpu.dynamic_rotate %60 by %c240_i32_21 dim 1 : vector<4x256xf32>, i32 -> vector<4x256xf32>
    %86 = vector.extract_strided_slice %2 {offsets = [7, 0], sizes = [1, 256], strides = [1, 1]} : vector<9x256xf32> to vector<1x256xf32>
    %87 = vector.broadcast %86 : vector<1x256xf32> to vector<4x256xf32>
    %88 = arith.mulf %85, %87 : vector<4x256xf32>
    %c239_i32_22 = arith.constant 239 : i32
    %89 = tpu.dynamic_rotate %60 by %c239_i32_22 dim 1 : vector<4x256xf32>, i32 -> vector<4x256xf32>
    %90 = vector.extract_strided_slice %2 {offsets = [8, 0], sizes = [1, 256], strides = [1, 1]} : vector<9x256xf32> to vector<1x256xf32>
    %91 = vector.broadcast %90 : vector<1x256xf32> to vector<4x256xf32>
    %92 = arith.mulf %89, %91 : vector<4x256xf32>
    %93 = tpu.concatenate %64, %68, %72, %76, %60, %80, %84, %88, %92 in 0 : vector<4x256xf32>, vector<4x256xf32>, vector<4x256xf32>, vector<4x256xf32>, vector<4x256xf32>, vector<4x256xf32>, vector<4x256xf32>, vector<4x256xf32>, vector<4x256xf32> -> vector<36x256xf32>
    %cst_23 = arith.constant dense<0.000000e+00> : vector<4x256xf32>
    %94 = tpu.matmul %1, %93, %cst_23 {dimension_numbers = #tpu.dot_dimension_numbers<[1], [0], [0], [1], [0, 0, 1, 1], [], []>} : vector<4x36xf32>, vector<36x256xf32>, vector<4x256xf32> -> vector<4x256xf32>
    %cst_24 = arith.constant dense<0.000000e+00> : vector<4xf32>
    %95 = vector.multi_reduction <add>, %94, %cst_24 [1] : vector<4x256xf32> to vector<4xf32>
    %96 = vector.shape_cast %95 : vector<4xf32> to vector<4x1xf32>
    %cst_25 = arith.constant 3.906250e-03 : f32
    %97 = vector.broadcast %cst_25 : f32 to vector<4x1xf32>
    %98 = arith.mulf %96, %97 : vector<4x1xf32>
    %99 = arith.mulf %94, %94 : vector<4x256xf32>
    %cst_26 = arith.constant dense<0.000000e+00> : vector<4xf32>
    %100 = vector.multi_reduction <add>, %99, %cst_26 [1] : vector<4x256xf32> to vector<4xf32>
    %101 = vector.shape_cast %100 : vector<4xf32> to vector<4x1xf32>
    %cst_27 = arith.constant 3.906250e-03 : f32
    %102 = vector.broadcast %cst_27 : f32 to vector<4x1xf32>
    %103 = arith.mulf %101, %102 : vector<4x1xf32>
    %104 = arith.mulf %98, %98 : vector<4x1xf32>
    %105 = arith.subf %103, %104 : vector<4x1xf32>
    %cst_28 = arith.constant 0.000000e+00 : f32
    %106 = vector.broadcast %cst_28 : f32 to vector<4x1xf32>
    %107 = arith.maximumf %105, %106 : vector<4x1xf32>
    %108 = vector.broadcast %98 : vector<4x1xf32> to vector<4x256xf32>
    %109 = arith.subf %94, %108 : vector<4x256xf32>
    %cst_29 = arith.constant 9.99999974E-6 : f32
    %110 = vector.broadcast %cst_29 : f32 to vector<4x1xf32>
    %111 = arith.addf %107, %110 : vector<4x1xf32>
    %112 = math.rsqrt %111 : vector<4x1xf32>
    %113 = vector.broadcast %112 : vector<4x1xf32> to vector<4x256xf32>
    %114 = arith.mulf %109, %113 : vector<4x256xf32>
    %115 = arith.addf %114, %4 : vector<4x256xf32>
    %cst_30 = arith.constant 0.000000e+00 : f32
    %116 = vector.broadcast %cst_30 : f32 to vector<4x256xf32>
    %117 = arith.maximumf %115, %116 : vector<4x256xf32>
    %c0_31 = arith.constant 0 : index
    %c0_32 = arith.constant 0 : index
    %c0_33 = arith.constant 0 : index
    %118 = vector.load %arg5[%c0_31, %c0_32, %c0_33] : memref<2x4x256xf32, #tpu.memory_space<vmem>>, vector<1x4x256xf32>
    %119 = vector.shape_cast %118 : vector<1x4x256xf32> to vector<4x256xf32>
    %120 = vector.shape_cast %117 : vector<4x256xf32> to vector<1x4x256xf32>
    tpu.vector_store %arg5[%c0_31, %c0_32, %c0_33], %120 {strides = array<i32>} : memref<2x4x256xf32, #tpu.memory_space<vmem>>, vector<1x4x256xf32>,
    %c1 = arith.constant 1 : index
    %c0_34 = arith.constant 0 : index
    %c0_35 = arith.constant 0 : index
    %121 = vector.load %arg1[%c1, %c0_34, %c0_35] : memref<2x4x256xf32, #tpu.memory_space<vmem>>, vector<1x4x256xf32>
    %122 = vector.shape_cast %121 : vector<1x4x256xf32> to vector<4x256xf32>
    %c17_i32_36 = arith.constant 17 : i32
    %123 = tpu.dynamic_rotate %122 by %c17_i32_36 dim 1 : vector<4x256xf32>, i32 -> vector<4x256xf32>
    %124 = vector.extract_strided_slice %2 {offsets = [0, 0], sizes = [1, 256], strides = [1, 1]} : vector<9x256xf32> to vector<1x256xf32>
    %125 = vector.broadcast %124 : vector<1x256xf32> to vector<4x256xf32>
    %126 = arith.mulf %123, %125 : vector<4x256xf32>
    %c16_i32_37 = arith.constant 16 : i32
    %127 = tpu.dynamic_rotate %122 by %c16_i32_37 dim 1 : vector<4x256xf32>, i32 -> vector<4x256xf32>
    %128 = vector.extract_strided_slice %2 {offsets = [1, 0], sizes = [1, 256], strides = [1, 1]} : vector<9x256xf32> to vector<1x256xf32>
    %129 = vector.broadcast %128 : vector<1x256xf32> to vector<4x256xf32>
    %130 = arith.mulf %127, %129 : vector<4x256xf32>
    %c15_i32_38 = arith.constant 15 : i32
    %131 = tpu.dynamic_rotate %122 by %c15_i32_38 dim 1 : vector<4x256xf32>, i32 -> vector<4x256xf32>
    %132 = vector.extract_strided_slice %2 {offsets = [2, 0], sizes = [1, 256], strides = [1, 1]} : vector<9x256xf32> to vector<1x256xf32>
    %133 = vector.broadcast %132 : vector<1x256xf32> to vector<4x256xf32>
    %134 = arith.mulf %131, %133 : vector<4x256xf32>
    %c1_i32_39 = arith.constant 1 : i32
    %135 = tpu.dynamic_rotate %122 by %c1_i32_39 dim 1 : vector<4x256xf32>, i32 -> vector<4x256xf32>
    %136 = vector.extract_strided_slice %2 {offsets = [3, 0], sizes = [1, 256], strides = [1, 1]} : vector<9x256xf32> to vector<1x256xf32>
    %137 = vector.broadcast %136 : vector<1x256xf32> to vector<4x256xf32>
    %138 = arith.mulf %135, %137 : vector<4x256xf32>
    %c255_i32_40 = arith.constant 255 : i32
    %139 = tpu.dynamic_rotate %122 by %c255_i32_40 dim 1 : vector<4x256xf32>, i32 -> vector<4x256xf32>
    %140 = vector.extract_strided_slice %2 {offsets = [5, 0], sizes = [1, 256], strides = [1, 1]} : vector<9x256xf32> to vector<1x256xf32>
    %141 = vector.broadcast %140 : vector<1x256xf32> to vector<4x256xf32>
    %142 = arith.mulf %139, %141 : vector<4x256xf32>
    %c241_i32_41 = arith.constant 241 : i32
    %143 = tpu.dynamic_rotate %122 by %c241_i32_41 dim 1 : vector<4x256xf32>, i32 -> vector<4x256xf32>
    %144 = vector.extract_strided_slice %2 {offsets = [6, 0], sizes = [1, 256], strides = [1, 1]} : vector<9x256xf32> to vector<1x256xf32>
    %145 = vector.broadcast %144 : vector<1x256xf32> to vector<4x256xf32>
    %146 = arith.mulf %143, %145 : vector<4x256xf32>
    %c240_i32_42 = arith.constant 240 : i32
    %147 = tpu.dynamic_rotate %122 by %c240_i32_42 dim 1 : vector<4x256xf32>, i32 -> vector<4x256xf32>
    %148 = vector.extract_strided_slice %2 {offsets = [7, 0], sizes = [1, 256], strides = [1, 1]} : vector<9x256xf32> to vector<1x256xf32>
    %149 = vector.broadcast %148 : vector<1x256xf32> to vector<4x256xf32>
    %150 = arith.mulf %147, %149 : vector<4x256xf32>
    %c239_i32_43 = arith.constant 239 : i32
    %151 = tpu.dynamic_rotate %122 by %c239_i32_43 dim 1 : vector<4x256xf32>, i32 -> vector<4x256xf32>
    %152 = vector.extract_strided_slice %2 {offsets = [8, 0], sizes = [1, 256], strides = [1, 1]} : vector<9x256xf32> to vector<1x256xf32>
    %153 = vector.broadcast %152 : vector<1x256xf32> to vector<4x256xf32>
    %154 = arith.mulf %151, %153 : vector<4x256xf32>
    %155 = tpu.concatenate %126, %130, %134, %138, %122, %142, %146, %150, %154 in 0 : vector<4x256xf32>, vector<4x256xf32>, vector<4x256xf32>, vector<4x256xf32>, vector<4x256xf32>, vector<4x256xf32>, vector<4x256xf32>, vector<4x256xf32>, vector<4x256xf32> -> vector<36x256xf32>
    %cst_44 = arith.constant dense<0.000000e+00> : vector<4x256xf32>
    %156 = tpu.matmul %0, %155, %cst_44 {dimension_numbers = #tpu.dot_dimension_numbers<[1], [0], [0], [1], [0, 0, 1, 1], [], []>} : vector<4x36xf32>, vector<36x256xf32>, vector<4x256xf32> -> vector<4x256xf32>
    %cst_45 = arith.constant dense<0.000000e+00> : vector<4xf32>
    %157 = vector.multi_reduction <add>, %156, %cst_45 [1] : vector<4x256xf32> to vector<4xf32>
    %158 = vector.shape_cast %157 : vector<4xf32> to vector<4x1xf32>
    %cst_46 = arith.constant 3.906250e-03 : f32
    %159 = vector.broadcast %cst_46 : f32 to vector<4x1xf32>
    %160 = arith.mulf %158, %159 : vector<4x1xf32>
    %161 = arith.mulf %156, %156 : vector<4x256xf32>
    %cst_47 = arith.constant dense<0.000000e+00> : vector<4xf32>
    %162 = vector.multi_reduction <add>, %161, %cst_47 [1] : vector<4x256xf32> to vector<4xf32>
    %163 = vector.shape_cast %162 : vector<4xf32> to vector<4x1xf32>
    %cst_48 = arith.constant 3.906250e-03 : f32
    %164 = vector.broadcast %cst_48 : f32 to vector<4x1xf32>
    %165 = arith.mulf %163, %164 : vector<4x1xf32>
    %166 = arith.mulf %160, %160 : vector<4x1xf32>
    %167 = arith.subf %165, %166 : vector<4x1xf32>
    %cst_49 = arith.constant 0.000000e+00 : f32
    %168 = vector.broadcast %cst_49 : f32 to vector<4x1xf32>
    %169 = arith.maximumf %167, %168 : vector<4x1xf32>
    %170 = vector.broadcast %160 : vector<4x1xf32> to vector<4x256xf32>
    %171 = arith.subf %156, %170 : vector<4x256xf32>
    %cst_50 = arith.constant 9.99999974E-6 : f32
    %172 = vector.broadcast %cst_50 : f32 to vector<4x1xf32>
    %173 = arith.addf %169, %172 : vector<4x1xf32>
    %174 = math.rsqrt %173 : vector<4x1xf32>
    %175 = vector.broadcast %174 : vector<4x1xf32> to vector<4x256xf32>
    %176 = arith.mulf %171, %175 : vector<4x256xf32>
    %cst_51 = arith.constant 0.000000e+00 : f32
    %177 = vector.broadcast %cst_51 : f32 to vector<4x256xf32>
    %178 = arith.maximumf %176, %177 : vector<4x256xf32>
    %c17_i32_52 = arith.constant 17 : i32
    %179 = tpu.dynamic_rotate %178 by %c17_i32_52 dim 1 : vector<4x256xf32>, i32 -> vector<4x256xf32>
    %180 = vector.extract_strided_slice %2 {offsets = [0, 0], sizes = [1, 256], strides = [1, 1]} : vector<9x256xf32> to vector<1x256xf32>
    %181 = vector.broadcast %180 : vector<1x256xf32> to vector<4x256xf32>
    %182 = arith.mulf %179, %181 : vector<4x256xf32>
    %c16_i32_53 = arith.constant 16 : i32
    %183 = tpu.dynamic_rotate %178 by %c16_i32_53 dim 1 : vector<4x256xf32>, i32 -> vector<4x256xf32>
    %184 = vector.extract_strided_slice %2 {offsets = [1, 0], sizes = [1, 256], strides = [1, 1]} : vector<9x256xf32> to vector<1x256xf32>
    %185 = vector.broadcast %184 : vector<1x256xf32> to vector<4x256xf32>
    %186 = arith.mulf %183, %185 : vector<4x256xf32>
    %c15_i32_54 = arith.constant 15 : i32
    %187 = tpu.dynamic_rotate %178 by %c15_i32_54 dim 1 : vector<4x256xf32>, i32 -> vector<4x256xf32>
    %188 = vector.extract_strided_slice %2 {offsets = [2, 0], sizes = [1, 256], strides = [1, 1]} : vector<9x256xf32> to vector<1x256xf32>
    %189 = vector.broadcast %188 : vector<1x256xf32> to vector<4x256xf32>
    %190 = arith.mulf %187, %189 : vector<4x256xf32>
    %c1_i32_55 = arith.constant 1 : i32
    %191 = tpu.dynamic_rotate %178 by %c1_i32_55 dim 1 : vector<4x256xf32>, i32 -> vector<4x256xf32>
    %192 = vector.extract_strided_slice %2 {offsets = [3, 0], sizes = [1, 256], strides = [1, 1]} : vector<9x256xf32> to vector<1x256xf32>
    %193 = vector.broadcast %192 : vector<1x256xf32> to vector<4x256xf32>
    %194 = arith.mulf %191, %193 : vector<4x256xf32>
    %c255_i32_56 = arith.constant 255 : i32
    %195 = tpu.dynamic_rotate %178 by %c255_i32_56 dim 1 : vector<4x256xf32>, i32 -> vector<4x256xf32>
    %196 = vector.extract_strided_slice %2 {offsets = [5, 0], sizes = [1, 256], strides = [1, 1]} : vector<9x256xf32> to vector<1x256xf32>
    %197 = vector.broadcast %196 : vector<1x256xf32> to vector<4x256xf32>
    %198 = arith.mulf %195, %197 : vector<4x256xf32>
    %c241_i32_57 = arith.constant 241 : i32
    %199 = tpu.dynamic_rotate %178 by %c241_i32_57 dim 1 : vector<4x256xf32>, i32 -> vector<4x256xf32>
    %200 = vector.extract_strided_slice %2 {offsets = [6, 0], sizes = [1, 256], strides = [1, 1]} : vector<9x256xf32> to vector<1x256xf32>
    %201 = vector.broadcast %200 : vector<1x256xf32> to vector<4x256xf32>
    %202 = arith.mulf %199, %201 : vector<4x256xf32>
    %c240_i32_58 = arith.constant 240 : i32
    %203 = tpu.dynamic_rotate %178 by %c240_i32_58 dim 1 : vector<4x256xf32>, i32 -> vector<4x256xf32>
    %204 = vector.extract_strided_slice %2 {offsets = [7, 0], sizes = [1, 256], strides = [1, 1]} : vector<9x256xf32> to vector<1x256xf32>
    %205 = vector.broadcast %204 : vector<1x256xf32> to vector<4x256xf32>
    %206 = arith.mulf %203, %205 : vector<4x256xf32>
    %c239_i32_59 = arith.constant 239 : i32
    %207 = tpu.dynamic_rotate %178 by %c239_i32_59 dim 1 : vector<4x256xf32>, i32 -> vector<4x256xf32>
    %208 = vector.extract_strided_slice %2 {offsets = [8, 0], sizes = [1, 256], strides = [1, 1]} : vector<9x256xf32> to vector<1x256xf32>
    %209 = vector.broadcast %208 : vector<1x256xf32> to vector<4x256xf32>
    %210 = arith.mulf %207, %209 : vector<4x256xf32>
    %211 = tpu.concatenate %182, %186, %190, %194, %178, %198, %202, %206, %210 in 0 : vector<4x256xf32>, vector<4x256xf32>, vector<4x256xf32>, vector<4x256xf32>, vector<4x256xf32>, vector<4x256xf32>, vector<4x256xf32>, vector<4x256xf32>, vector<4x256xf32> -> vector<36x256xf32>
    %cst_60 = arith.constant dense<0.000000e+00> : vector<4x256xf32>
    %212 = tpu.matmul %1, %211, %cst_60 {dimension_numbers = #tpu.dot_dimension_numbers<[1], [0], [0], [1], [0, 0, 1, 1], [], []>} : vector<4x36xf32>, vector<36x256xf32>, vector<4x256xf32> -> vector<4x256xf32>
    %cst_61 = arith.constant dense<0.000000e+00> : vector<4xf32>
    %213 = vector.multi_reduction <add>, %212, %cst_61 [1] : vector<4x256xf32> to vector<4xf32>
    %214 = vector.shape_cast %213 : vector<4xf32> to vector<4x1xf32>
    %cst_62 = arith.constant 3.906250e-03 : f32
    %215 = vector.broadcast %cst_62 : f32 to vector<4x1xf32>
    %216 = arith.mulf %214, %215 : vector<4x1xf32>
    %217 = arith.mulf %212, %212 : vector<4x256xf32>
    %cst_63 = arith.constant dense<0.000000e+00> : vector<4xf32>
    %218 = vector.multi_reduction <add>, %217, %cst_63 [1] : vector<4x256xf32> to vector<4xf32>
    %219 = vector.shape_cast %218 : vector<4xf32> to vector<4x1xf32>
    %cst_64 = arith.constant 3.906250e-03 : f32
    %220 = vector.broadcast %cst_64 : f32 to vector<4x1xf32>
    %221 = arith.mulf %219, %220 : vector<4x1xf32>
    %222 = arith.mulf %216, %216 : vector<4x1xf32>
    %223 = arith.subf %221, %222 : vector<4x1xf32>
    %cst_65 = arith.constant 0.000000e+00 : f32
    %224 = vector.broadcast %cst_65 : f32 to vector<4x1xf32>
    %225 = arith.maximumf %223, %224 : vector<4x1xf32>
    %226 = vector.broadcast %216 : vector<4x1xf32> to vector<4x256xf32>
    %227 = arith.subf %212, %226 : vector<4x256xf32>
    %cst_66 = arith.constant 9.99999974E-6 : f32
    %228 = vector.broadcast %cst_66 : f32 to vector<4x1xf32>
    %229 = arith.addf %225, %228 : vector<4x1xf32>
    %230 = math.rsqrt %229 : vector<4x1xf32>
    %231 = vector.broadcast %230 : vector<4x1xf32> to vector<4x256xf32>
    %232 = arith.mulf %227, %231 : vector<4x256xf32>
    %233 = arith.addf %232, %122 : vector<4x256xf32>
    %cst_67 = arith.constant 0.000000e+00 : f32
    %234 = vector.broadcast %cst_67 : f32 to vector<4x256xf32>
    %235 = arith.maximumf %233, %234 : vector<4x256xf32>
    %c1_68 = arith.constant 1 : index
    %c0_69 = arith.constant 0 : index
    %c0_70 = arith.constant 0 : index
    %236 = vector.load %arg5[%c1_68, %c0_69, %c0_70] : memref<2x4x256xf32, #tpu.memory_space<vmem>>, vector<1x4x256xf32>
    %237 = vector.shape_cast %236 : vector<1x4x256xf32> to vector<4x256xf32>
    %238 = vector.shape_cast %235 : vector<4x256xf32> to vector<1x4x256xf32>
    tpu.vector_store %arg5[%c1_68, %c0_69, %c0_70], %238 {strides = array<i32>} : memref<2x4x256xf32, #tpu.memory_space<vmem>>, vector<1x4x256xf32>,
    return
  }
  func.func @transform_0(%arg0: i32) -> (i32, i32, i32) {
    %c0_i32 = arith.constant 0 : i32
    %c0_i32_0 = arith.constant 0 : i32
    %c0_i32_1 = arith.constant 0 : i32
    return %arg0, %c0_i32, %c0_i32_0 : i32, i32, i32
  }
  func.func @transform_1(%arg0: i32) -> (i32, i32) {
    %c0_i32 = arith.constant 0 : i32
    %c0_i32_0 = arith.constant 0 : i32
    %c0_i32_1 = arith.constant 0 : i32
    return %c0_i32, %c0_i32_0 : i32, i32
  }
  func.func @transform_2(%arg0: i32) -> (i32, i32) {
    %c0_i32 = arith.constant 0 : i32
    %c0_i32_0 = arith.constant 0 : i32
    %c0_i32_1 = arith.constant 0 : i32
    return %c0_i32, %c0_i32_0 : i32, i32
  }
  func.func @transform_3(%arg0: i32) -> (i32, i32) {
    %c0_i32 = arith.constant 0 : i32
    %c0_i32_0 = arith.constant 0 : i32
    %c0_i32_1 = arith.constant 0 : i32
    return %c0_i32, %c0_i32_0 : i32, i32
  }
  func.func @transform_4(%arg0: i32) -> (i32, i32, i32) {
    %c0_i32 = arith.constant 0 : i32
    %c0_i32_0 = arith.constant 0 : i32
    %c0_i32_1 = arith.constant 0 : i32
    return %arg0, %c0_i32, %c0_i32_0 : i32, i32, i32
  }
}

</mosaic_0001>

<llo_original>
// kernel: tpu_custom_call.1
$region0: #{tpu_custom_call.1}
  #allocation0 [shape = 'u32[]', space=smem, size = 0x4, offset = 0x4, fixed_abs, tag = 'smem constant byte address 0x4 - core index']
  #allocation1 [shape = 'u32[144,128]{1,0:T(1,128)}', space=vmem, size = 0x12000, scoped, tag = 'internal scratch']
  %s0 = inlined_call_operand.hbm [shape: f32[2,4,256], index: 0, kind: input, shape index: {}]
  %s1 = inlined_call_operand.hbm [shape: f32[4,36], index: 1, kind: input, shape index: {}]
  %s2 = inlined_call_operand.hbm [shape: f32[4,36], index: 2, kind: input, shape index: {}]
  %s3 = inlined_call_operand.hbm [shape: f32[9,256], index: 3, kind: input, shape index: {}]
  %s4 = inlined_call_operand.hbm [shape: f32[2,4,256], index: 4, kind: output, shape index: {}]
  %s5 = sld [smem:[#allocation0]]
  $region42: #{tpu_custom_call.1} parent=0
    _
  %s7 = ssub.s32 1, %s5
  %s8 = scalar_select 0, %s7, %s5
  $region1: #{tpu_custom_call.1} parent=0
    #allocation2 [shape = 'u8[8192]{0}', space=vmem, size = 0x2000, scoped, tag = 'input window, operand 0, single buffered']
    #allocation3 [shape = 's32[1]{0}', space=sflag, size = 0x4, scoped, tag = 'scoped memory for tpu_custom_call.1']
    #allocation4 [shape = 's32[1]{0}', space=sflag, size = 0x4, scoped, tag = 'scoped memory for tpu_custom_call.1']
    #allocation5 [shape = 'u8[2048]{0}', space=vmem, size = 0x800, scoped, tag = 'input window, operand 1, single buffered']
    #allocation6 [shape = 's32[1]{0}', space=sflag, size = 0x4, scoped, tag = 'scoped memory for tpu_custom_call.1']
    #allocation7 [shape = 'u8[2048]{0}', space=vmem, size = 0x800, scoped, tag = 'input window, operand 2, single buffered']
    #allocation8 [shape = 'u8[16384]{0}', space=vmem, size = 0x4000, scoped, tag = 'input window, operand 3, single buffered']
    #allocation9 [shape = 's32[1]{0}', space=sflag, size = 0x4, scoped, tag = 'scoped memory for tpu_custom_call.1']
    #allocation10 [shape = 'u8[8192]{0}', space=vmem, size = 0x2000, scoped, tag = 'output window, operand 0, single buffered']
    %9 = vsyncpa [#allocation3], 0
    %10 = vsyncpa [#allocation6], 0
    %11 = vsyncpa [#allocation9], 0
    %12 = vsyncpa [#allocation4], 0
    // Predicated region
    $region2: #{tpu_custom_call.1} parent=1 // pred_check
      _
    $region3: #{tpu_custom_call.1} parent=1 // pred_check_branch
      %14 = sbr.rel (0) target = $region5
    $region4: #{tpu_custom_call.1} parent=1 // pred_region
      %s16 = ssub.s32 256, 256
      %17 = vsyncadd [#allocation3], %s16
      %s18 = sshll.u32 [#allocation2], 4
      %s19 = int_to_ptr.vmem [resolvable:$true] %s18
      %24 = dma.hbm_to_vmem [thread:$0]  %s0, 256, %s19, [#allocation3], 128, 128, 8
    $region5: #{tpu_custom_call.1} parent=1 // pred_fallthru
      _
    // Predicated region
    $region6: #{tpu_custom_call.1} parent=1 // pred_check
      _
    $region7: #{tpu_custom_call.1} parent=1 // pred_check_branch
      %26 = sbr.rel (0) target = $region9
    $region8: #{tpu_custom_call.1} parent=1 // pred_region
      %s28 = ssub.s32 64, 64
      %29 = vsyncadd [#allocation6], %s28
      %s31 = sshll.u32 [#allocation5], 4
      %s32 = int_to_ptr.vmem [resolvable:$true] %s31
      %34 = dma.hbm_to_vmem [thread:$0]  %s1, 64, %s32, [#allocation6]
    $region9: #{tpu_custom_call.1} parent=1 // pred_fallthru
      _
    // Predicated region
    $region10: #{tpu_custom_call.1} parent=1 // pred_check
      _
    $region11: #{tpu_custom_call.1} parent=1 // pred_check_branch
      %36 = sbr.rel (0) target = $region13
    $region12: #{tpu_custom_call.1} parent=1 // pred_region
      %s38 = ssub.s32 64, 64
      %39 = vsyncadd [#allocation6], %s38
      %s41 = sshll.u32 [#allocation7], 4
      %s42 = int_to_ptr.vmem [resolvable:$true] %s41
      %44 = dma.hbm_to_vmem [thread:$0]  %s2, 64, %s42, [#allocation6]
    $region13: #{tpu_custom_call.1} parent=1 // pred_fallthru
      _
    // Predicated region
    $region14: #{tpu_custom_call.1} parent=1 // pred_check
      _
    $region15: #{tpu_custom_call.1} parent=1 // pred_check_branch
      %46 = sbr.rel (0) target = $region17
    $region16: #{tpu_custom_call.1} parent=1 // pred_region
      %s48 = ssub.s32 512, 512
      %49 = vsyncadd [#allocation9], %s48
      %s50 = sshll.u32 [#allocation8], 4
      %s51 = int_to_ptr.vmem [resolvable:$true] %s50
      %56 = dma.hbm_to_vmem [thread:$0]  %s3, 512, %s51, [#allocation9], 256, 256, 16
    $region17: #{tpu_custom_call.1} parent=1 // pred_fallthru
      _
    // Predicated region
    $region18: #{tpu_custom_call.1} parent=1 // pred_check
      _
    $region19: #{tpu_custom_call.1} parent=1 // pred_check_branch
      %58 = sbr.rel (0) target = $region21
    $region20: #{tpu_custom_call.1} parent=1 // pred_region
      %59 = dma.done [#allocation3], 256
    $region21: #{tpu_custom_call.1} parent=1 // pred_fallthru
      _
    // Predicated region
    $region22: #{tpu_custom_call.1} parent=1 // pred_check
      _
    $region23: #{tpu_custom_call.1} parent=1 // pred_check_branch
      %61 = sbr.rel (0) target = $region25
    $region24: #{tpu_custom_call.1} parent=1 // pred_region
      %62 = dma.done [#allocation6], 64
    $region25: #{tpu_custom_call.1} parent=1 // pred_fallthru
      _
    // Predicated region
    $region26: #{tpu_custom_call.1} parent=1 // pred_check
      _
    $region27: #{tpu_custom_call.1} parent=1 // pred_check_branch
      %64 = sbr.rel (0) target = $region29
    $region28: #{tpu_custom_call.1} parent=1 // pred_region
      %65 = dma.done [#allocation6], 64
    $region29: #{tpu_custom_call.1} parent=1 // pred_fallthru
      _
    // Predicated region
    $region30: #{tpu_custom_call.1} parent=1 // pred_check
      _
    $region31: #{tpu_custom_call.1} parent=1 // pred_check_branch
      %67 = sbr.rel (0) target = $region33
    $region32: #{tpu_custom_call.1} parent=1 // pred_region
      %68 = dma.done [#allocation9], 512
    $region33: #{tpu_custom_call.1} parent=1 // pred_fallthru
      _
    %v69 = vld [vmem:[#allocation5] sm:$0xf]
    %v70 = vld [vmem:[#allocation7] sm:$0xf]
    %v71 = vld [vmem:[#allocation8] sm:$0xff]
    %v72 = vld [vmem:[#allocation8 + $0x8] sm:$0xff]
    %v73 = vld [vmem:[#allocation8 + $0x10] sm:$0x1]
    %v74 = vld [vmem:[#allocation8 + $0x18] sm:$0x1]
    %v75 = vld [vmem:[#allocation2] sm:$0xff]
    %v77 = vcombine.high %v75, %v75
    %79 = vrot.lane.b32.xlu0 %v75, 17
    %v80 = vpop.permute.xlu0 %79
    %81 = vrot.lane.b32.xlu0 %v77, 17
    %v82 = vpop.permute.xlu0 %81
    %v83 = vlaneseq
    %v84 = vand.u32 %v83, 127
    %vm85 = vcmp.lt.s32.totalorder %v84, 17
    %v86 = vsel %vm85, %v80, %v82
    %v87 = vsel %vm85, %v82, %v80
    %v88 = vlaneseq
    %v89 = vshrl.u32 %v88, 7
    %v90 = vsub.s32 0, %v89
    %v91 = vrot.slane %v71, %v90
    %v92 = vlaneseq
    %v93 = vshrl.u32 %v92, 7
    %v94 = vsub.s32 0, %v93
    %v95 = vrot.slane %v72, %v94
    %v96 = vmul.f32 %v87, %v91
    %v97 = vmul.f32 %v86, %v95
    %98 = vrot.lane.b32.xlu0 %v75, 16
    %v99 = vpop.permute.xlu0 %98
    %100 = vrot.lane.b32.xlu0 %v77, 16
    %v101 = vpop.permute.xlu0 %100
    %vm102 = vcmp.lt.s32.totalorder %v84, 16
    %v103 = vsel %vm102, %v99, %v101
    %v104 = vsel %vm102, %v101, %v99
    %v105 = vlaneseq
    %v106 = vshrl.u32 %v105, 7
    %v107 = vsub.s32 1, %v106
    %v108 = vrot.slane %v71, %v107
    %v109 = vlaneseq
    %v110 = vshrl.u32 %v109, 7
    %v111 = vsub.s32 1, %v110
    %v112 = vrot.slane %v72, %v111
    %v113 = vmul.f32 %v104, %v108
    %v114 = vmul.f32 %v103, %v112
    %115 = vrot.lane.b32.xlu0 %v75, 15
    %v116 = vpop.permute.xlu0 %115
    %117 = vrot.lane.b32.xlu0 %v77, 15
    %v118 = vpop.permute.xlu0 %117
    %vm119 = vcmp.lt.s32.totalorder %v84, 15
    %v120 = vsel %vm119, %v116, %v118
    %v121 = vsel %vm119, %v118, %v116
    %v122 = vlaneseq
    %v123 = vshrl.u32 %v122, 7
    %v124 = vsub.s32 2, %v123
    %v125 = vrot.slane %v71, %v124
    %v126 = vlaneseq
    %v127 = vshrl.u32 %v126, 7
    %v128 = vsub.s32 2, %v127
    %v129 = vrot.slane %v72, %v128
    %v130 = vmul.f32 %v121, %v125
    %v131 = vmul.f32 %v120, %v129
    %132 = vrot.lane.b32.xlu0 %v75, 1
    %v133 = vpop.permute.xlu0 %132
    %134 = vrot.lane.b32.xlu0 %v77, 1
    %v135 = vpop.permute.xlu0 %134
    %vm136 = vcmp.lt.s32.totalorder %v84, 1
    %v137 = vsel %vm136, %v133, %v135
    %v138 = vsel %vm136, %v135, %v133
    %v139 = vlaneseq
    %v140 = vshrl.u32 %v139, 7
    %v141 = vsub.s32 3, %v140
    %v142 = vrot.slane %v71, %v141
    %v143 = vlaneseq
    %v144 = vshrl.u32 %v143, 7
    %v145 = vsub.s32 3, %v144
    %v146 = vrot.slane %v72, %v145
    %v147 = vmul.f32 %v138, %v142
    %v148 = vmul.f32 %v137, %v146
    %149 = vrot.lane.b32.xlu0 %v75, 127
    %v150 = vpop.permute.xlu0 %149
    %151 = vrot.lane.b32.xlu0 %v77, 127
    %v152 = vpop.permute.xlu0 %151
    %vm153 = vcmp.lt.s32.totalorder %v84, 127
    %v154 = vsel %vm153, %v150, %v152
    %v155 = vsel %vm153, %v152, %v150
    %v156 = vlaneseq
    %v157 = vshrl.u32 %v156, 7
    %v158 = vsub.s32 5, %v157
    %v159 = vrot.slane %v71, %v158
    %v160 = vlaneseq
    %v161 = vshrl.u32 %v160, 7
    %v162 = vsub.s32 5, %v161
    %v163 = vrot.slane %v72, %v162
    %v164 = vmul.f32 %v154, %v159
    %v165 = vmul.f32 %v155, %v163
    %166 = vrot.lane.b32.xlu0 %v75, 113
    %v167 = vpop.permute.xlu0 %166
    %168 = vrot.lane.b32.xlu0 %v77, 113
    %v169 = vpop.permute.xlu0 %168
    %vm170 = vcmp.lt.s32.totalorder %v84, 113
    %v171 = vsel %vm170, %v167, %v169
    %v172 = vsel %vm170, %v169, %v167
    %v173 = vlaneseq
    %v174 = vshrl.u32 %v173, 7
    %v175 = vsub.s32 6, %v174
    %v176 = vrot.slane %v71, %v175
    %v177 = vlaneseq
    %v178 = vshrl.u32 %v177, 7
    %v179 = vsub.s32 6, %v178
    %v180 = vrot.slane %v72, %v179
    %v181 = vmul.f32 %v171, %v176
    %v182 = vmul.f32 %v172, %v180
    %183 = vrot.lane.b32.xlu0 %v75, 112
    %v184 = vpop.permute.xlu0 %183
    %185 = vrot.lane.b32.xlu0 %v77, 112
    %v186 = vpop.permute.xlu0 %185
    %vm187 = vcmp.lt.s32.totalorder %v84, 112
    %v188 = vsel %vm187, %v184, %v186
    %v189 = vsel %vm187, %v186, %v184
    %v190 = vlaneseq
    %v191 = vshrl.u32 %v190, 7
    %v192 = vsub.s32 7, %v191
    %v193 = vrot.slane %v71, %v192
    %v194 = vlaneseq
    %v195 = vshrl.u32 %v194, 7
    %v196 = vsub.s32 7, %v195
    %v197 = vrot.slane %v72, %v196
    %v198 = vmul.f32 %v188, %v193
    %v199 = vmul.f32 %v189, %v197
    %200 = vrot.lane.b32.xlu0 %v75, 111
    %v201 = vpop.permute.xlu0 %200
    %202 = vrot.lane.b32.xlu0 %v77, 111
    %v203 = vpop.permute.xlu0 %202
    %vm204 = vcmp.lt.s32.totalorder %v84, 111
    %v205 = vsel %vm204, %v201, %v203
    %v206 = vsel %vm204, %v203, %v201
    %v207 = vlaneseq
    %v208 = vshrl.u32 %v207, 7
    %v209 = vsub.s32 0, %v208
    %v210 = vrot.slane %v73, %v209
    %v211 = vlaneseq
    %v212 = vshrl.u32 %v211, 7
    %v213 = vsub.s32 0, %v212
    %v214 = vrot.slane %v74, %v213
    %v215 = vmul.f32 %v205, %v210
    %v216 = vmul.f32 %v206, %v214
    %v219 = vrot.slane %v113, 4
    %v220 = vrot.slane %v114, 4
    %v225 = vrot.slane %v147, 4
    %v226 = vrot.slane %v148, 4
    %v231 = vrot.slane %v164, 4
    %v232 = vrot.slane %v165, 4
    %v237 = vrot.slane %v198, 4
    %v238 = vrot.slane %v199, 4
    %vm241 = vcmask 1043456
    %v242 = vsel %vm241, %v96, %v219
    %v243 = vsel %vm241, %v97, %v220
    %v244 = vsel %vm241, %v130, %v225
    %v245 = vsel %vm241, %v131, %v226
    %v246 = vsel %vm241, %v75, %v231
    %v247 = vsel %vm241, %v77, %v232
    %v248 = vsel %vm241, %v181, %v237
    %v249 = vsel %vm241, %v182, %v238
    %vm250 = vcmask 293888
    %v252 = vsel %vm250, %v69, 0
    %v255 = vsel %vm241, %v215, 0
    %v258 = vsel %vm241, %v216, 0
    %260 = vmatprep.subr.mxu0 0.0
    %261 = vmatpush1.msra.mxu0 0.0
    %262 = vmatprep.subr.mxu0 0.0
    %263 = vmatpush1.msra.mxu0 0.0
    %264 = vmatprep.subr.mxu0 0.0
    %265 = vmatpush1.msra.mxu0 0.0
    %266 = vmatprep.subr.mxu0 0.0
    %267 = vmatpush1.msra.mxu0 0.0
    %268 = vmatprep.subr.mxu0 0.0
    %269 = vmatpush1.msra.mxu0 0.0
    %270 = vmatprep.subr.mxu0 0.0
    %271 = vmatpush1.msra.mxu0 0.0
    %272 = vmatprep.subr.mxu0 0.0
    %273 = vmatpush1.msra.mxu0 0.0
    %274 = vmatprep.subr.mxu0 0.0
    %275 = vmatpush1.msra.mxu0 0.0
    %276 = vmatprep.subr.mxu0 0.0
    %277 = vmatpush1.msra.mxu0 0.0
    %278 = vmatprep.subr.mxu0 0.0
    %279 = vmatpush1.msra.mxu0 0.0
    %280 = vmatprep.subr.mxu0 0.0
    %281 = vmatpush1.msra.mxu0 0.0
    %282 = vmatprep.subr.mxu0 %v258
    %283 = vmatpush1.msra.mxu0 %v255
    %284 = vmatprep.subr.mxu0 %v249
    %285 = vmatpush1.msra.mxu0 %v248
    %286 = vmatprep.subr.mxu0 %v247
    %287 = vmatpush1.msra.mxu0 %v246
    %288 = vmatprep.subr.mxu0 %v245
    %289 = vmatpush1.msra.mxu0 %v244
    %290 = vmatprep.subr.mxu0 %v243
    %291 = vmatpush1.msra.mxu0 %v242
    %292 = vmatprep.subr.mxu0 0.0
    %293 = vmatpush2.msra.mxu0 0.0
    %294 = vmatprep.subr.mxu0 0.0
    %295 = vmatpush2.msra.mxu0 0.0
    %296 = vmatprep.subr.mxu0 0.0
    %297 = vmatpush2.msra.mxu0 0.0
    %298 = vmatprep.subr.mxu0 0.0
    %299 = vmatpush2.msra.mxu0 0.0
    %300 = vmatprep.subr.mxu0 0.0
    %301 = vmatpush2.msra.mxu0 0.0
    %302 = vmatprep.subr.mxu0 0.0
    %303 = vmatpush2.msra.mxu0 0.0
    %304 = vmatprep.subr.mxu0 0.0
    %305 = vmatpush2.msra.mxu0 0.0
    %306 = vmatprep.subr.mxu0 0.0
    %307 = vmatpush2.msra.mxu0 0.0
    %308 = vmatprep.subr.mxu0 0.0
    %309 = vmatpush2.msra.mxu0 0.0
    %310 = vmatprep.subr.mxu0 0.0
    %311 = vmatpush2.msra.mxu0 0.0
    %312 = vmatprep.subr.mxu0 0.0
    %313 = vmatpush2.msra.mxu0 0.0
    %314 = vmatprep.subr.mxu0 0.0
    %315 = vmatpush2.msra.mxu0 0.0
    %316 = vmatprep.subr.mxu0 0.0
    %317 = vmatpush2.msra.mxu0 0.0
    %318 = vmatprep.subr.mxu0 0.0
    %319 = vmatpush2.msra.mxu0 0.0
    %320 = vmatprep.subr.mxu0 0.0
    %321 = vmatpush2.msra.mxu0 0.0
    %322 = vmatprep.subr.mxu0 0.0
    %323 = vmatpush2.msra.mxu0 0.0
    %324 = vmatprep.mubr.f32.mxu0 0.0
    %325 = vmatmul.mubr.f32.gmra.mxu0 %v252
    %v326 = vpop.f32.mrf.mxu0
    %v327 = vadd.f32 0.0, %v326
    %v328 = vpop.f32.mrf.mxu0
    %v329 = vadd.f32 0.0, %v328
    %330 = vdwg.mxu0
    %v331 = vsel %vm241, %v327, 0.0
    %v332 = vsel %vm241, %v329, 0.0
    %v333 = vadd.f32 %v331, %v332
    %334 = vadd.xlane.f32.xlu0 %v333
    %v335 = vpop.xlane.xlu0 %334
    %v336 = vmul.f32 %v335, 0.00390625
    %v337 = vmul.f32 %v327, %v327
    %v338 = vmul.f32 %v329, %v329
    %v339 = vsel %vm241, %v337, 0.0
    %v340 = vsel %vm241, %v338, 0.0
    %v341 = vadd.f32 %v339, %v340
    %342 = vadd.xlane.f32.xlu0 %v341
    %v343 = vpop.xlane.xlu0 %342
    %v344 = vmul.f32 %v343, 0.00390625
    %v345 = vmul.f32 %v336, %v336
    %v346 = vsub.f32 %v344, %v345
    %v347 = vmax.f32 %v346, 0.0
    %v348 = vsub.f32 %v327, %v336
    %v349 = vsub.f32 %v329, %v336
    %v350 = vadd.f32 %v347, 1e-05
    %v351 = vrsqrt.pop %v350
    %v352 = vmul.f32 %v348, %v351
    %v353 = vmul.f32 %v349, %v351
    %v354 = vmax.f32 %v352, 0.0
    %v355 = vmax.f32 %v353, 0.0
    %356 = vrot.lane.b32.xlu0 %v354, 17
    %v357 = vpop.permute.xlu0 %356
    %358 = vrot.lane.b32.xlu0 %v355, 17
    %v359 = vpop.permute.xlu0 %358
    %v360 = vsel %vm85, %v357, %v359
    %v361 = vsel %vm85, %v359, %v357
    %v362 = vmul.f32 %v361, %v91
    %v363 = vmul.f32 %v360, %v95
    %364 = vrot.lane.b32.xlu0 %v354, 16
    %v365 = vpop.permute.xlu0 %364
    %366 = vrot.lane.b32.xlu0 %v355, 16
    %v367 = vpop.permute.xlu0 %366
    %v368 = vsel %vm102, %v365, %v367
    %v369 = vsel %vm102, %v367, %v365
    %v370 = vmul.f32 %v369, %v108
    %v371 = vmul.f32 %v368, %v112
    %372 = vrot.lane.b32.xlu0 %v354, 15
    %v373 = vpop.permute.xlu0 %372
    %374 = vrot.lane.b32.xlu0 %v355, 15
    %v375 = vpop.permute.xlu0 %374
    %v376 = vsel %vm119, %v373, %v375
    %v377 = vsel %vm119, %v375, %v373
    %v378 = vmul.f32 %v377, %v125
    %v379 = vmul.f32 %v376, %v129
    %380 = vrot.lane.b32.xlu0 %v354, 1
    %v381 = vpop.permute.xlu0 %380
    %382 = vrot.lane.b32.xlu0 %v355, 1
    %v383 = vpop.permute.xlu0 %382
    %v384 = vsel %vm136, %v381, %v383
    %v385 = vsel %vm136, %v383, %v381
    %v386 = vmul.f32 %v385, %v142
    %v387 = vmul.f32 %v384, %v146
    %388 = vrot.lane.b32.xlu0 %v354, 127
    %v389 = vpop.permute.xlu0 %388
    %390 = vrot.lane.b32.xlu0 %v355, 127
    %v391 = vpop.permute.xlu0 %390
    %v392 = vsel %vm153, %v389, %v391
    %v393 = vsel %vm153, %v391, %v389
    %v394 = vmul.f32 %v392, %v159
    %v395 = vmul.f32 %v393, %v163
    %396 = vrot.lane.b32.xlu0 %v354, 113
    %v397 = vpop.permute.xlu0 %396
    %398 = vrot.lane.b32.xlu0 %v355, 113
    %v399 = vpop.permute.xlu0 %398
    %v400 = vsel %vm170, %v397, %v399
    %v401 = vsel %vm170, %v399, %v397
    %v402 = vmul.f32 %v400, %v176
    %v403 = vmul.f32 %v401, %v180
    %404 = vrot.lane.b32.xlu0 %v354, 112
    %v405 = vpop.permute.xlu0 %404
    %406 = vrot.lane.b32.xlu0 %v355, 112
    %v407 = vpop.permute.xlu0 %406
    %v408 = vsel %vm187, %v405, %v407
    %v409 = vsel %vm187, %v407, %v405
    %v410 = vmul.f32 %v408, %v193
    %v411 = vmul.f32 %v409, %v197
    %412 = vrot.lane.b32.xlu0 %v354, 111
    %v413 = vpop.permute.xlu0 %412
    %414 = vrot.lane.b32.xlu0 %v355, 111
    %v415 = vpop.permute.xlu0 %414
    %v416 = vsel %vm204, %v413, %v415
    %v417 = vsel %vm204, %v415, %v413
    %v418 = vmul.f32 %v416, %v210
    %v419 = vmul.f32 %v417, %v214
    %v422 = vrot.slane %v370, 4
    %v423 = vrot.slane %v371, 4
    %v428 = vrot.slane %v386, 4
    %v429 = vrot.slane %v387, 4
    %v434 = vrot.slane %v394, 4
    %v435 = vrot.slane %v395, 4
    %v440 = vrot.slane %v410, 4
    %v441 = vrot.slane %v411, 4
    %v444 = vsel %vm241, %v362, %v422
    %v445 = vsel %vm241, %v363, %v423
    %v446 = vsel %vm241, %v378, %v428
    %v447 = vsel %vm241, %v379, %v429
    %v448 = vsel %vm241, %v354, %v434
    %v449 = vsel %vm241, %v355, %v435
    %v450 = vsel %vm241, %v402, %v440
    %v451 = vsel %vm241, %v403, %v441
    %v453 = vsel %vm250, %v70, 0
    %v456 = vsel %vm241, %v418, 0
    %v459 = vsel %vm241, %v419, 0
    %461 = vmatprep.subr.mxu0 0.0
    %462 = vmatpush1.msra.mxu0 0.0
    %463 = vmatprep.subr.mxu0 0.0
    %464 = vmatpush1.msra.mxu0 0.0
    %465 = vmatprep.subr.mxu0 0.0
    %466 = vmatpush1.msra.mxu0 0.0
    %467 = vmatprep.subr.mxu0 0.0
    %468 = vmatpush1.msra.mxu0 0.0
    %469 = vmatprep.subr.mxu0 0.0
    %470 = vmatpush1.msra.mxu0 0.0
    %471 = vmatprep.subr.mxu0 0.0
    %472 = vmatpush1.msra.mxu0 0.0
    %473 = vmatprep.subr.mxu0 0.0
    %474 = vmatpush1.msra.mxu0 0.0
    %475 = vmatprep.subr.mxu0 0.0
    %476 = vmatpush1.msra.mxu0 0.0
    %477 = vmatprep.subr.mxu0 0.0
    %478 = vmatpush1.msra.mxu0 0.0
    %479 = vmatprep.subr.mxu0 0.0
    %480 = vmatpush1.msra.mxu0 0.0
    %481 = vmatprep.subr.mxu0 0.0
    %482 = vmatpush1.msra.mxu0 0.0
    %483 = vmatprep.subr.mxu0 %v459
    %484 = vmatpush1.msra.mxu0 %v456
    %485 = vmatprep.subr.mxu0 %v451
    %486 = vmatpush1.msra.mxu0 %v450
    %487 = vmatprep.subr.mxu0 %v449
    %488 = vmatpush1.msra.mxu0 %v448
    %489 = vmatprep.subr.mxu0 %v447
    %490 = vmatpush1.msra.mxu0 %v446
    %491 = vmatprep.subr.mxu0 %v445
    %492 = vmatpush1.msra.mxu0 %v444
    %493 = vmatprep.subr.mxu0 0.0
    %494 = vmatpush2.msra.mxu0 0.0
    %495 = vmatprep.subr.mxu0 0.0
    %496 = vmatpush2.msra.mxu0 0.0
    %497 = vmatprep.subr.mxu0 0.0
    %498 = vmatpush2.msra.mxu0 0.0
    %499 = vmatprep.subr.mxu0 0.0
    %500 = vmatpush2.msra.mxu0 0.0
    %501 = vmatprep.subr.mxu0 0.0
    %502 = vmatpush2.msra.mxu0 0.0
    %503 = vmatprep.subr.mxu0 0.0
    %504 = vmatpush2.msra.mxu0 0.0
    %505 = vmatprep.subr.mxu0 0.0
    %506 = vmatpush2.msra.mxu0 0.0
    %507 = vmatprep.subr.mxu0 0.0
    %508 = vmatpush2.msra.mxu0 0.0
    %509 = vmatprep.subr.mxu0 0.0
    %510 = vmatpush2.msra.mxu0 0.0
    %511 = vmatprep.subr.mxu0 0.0
    %512 = vmatpush2.msra.mxu0 0.0
    %513 = vmatprep.subr.mxu0 0.0
    %514 = vmatpush2.msra.mxu0 0.0
    %515 = vmatprep.subr.mxu0 0.0
    %516 = vmatpush2.msra.mxu0 0.0
    %517 = vmatprep.subr.mxu0 0.0
    %518 = vmatpush2.msra.mxu0 0.0
    %519 = vmatprep.subr.mxu0 0.0
    %520 = vmatpush2.msra.mxu0 0.0
    %521 = vmatprep.subr.mxu0 0.0
    %522 = vmatpush2.msra.mxu0 0.0
    %523 = vmatprep.subr.mxu0 0.0
    %524 = vmatpush2.msra.mxu0 0.0
    %525 = vmatprep.mubr.f32.mxu0 0.0
    %526 = vmatmul.mubr.f32.gmra.mxu0 %v453
    %v527 = vpop.f32.mrf.mxu0
    %v528 = vadd.f32 0.0, %v527
    %v529 = vpop.f32.mrf.mxu0
    %v530 = vadd.f32 0.0, %v529
    %531 = vdwg.mxu0
    %v532 = vsel %vm241, %v528, 0.0
    %v533 = vsel %vm241, %v530, 0.0
    %v534 = vadd.f32 %v532, %v533
    %535 = vadd.xlane.f32.xlu0 %v534
    %v536 = vpop.xlane.xlu0 %535
    %v537 = vmul.f32 %v536, 0.00390625
    %v538 = vmul.f32 %v528, %v528
    %v539 = vmul.f32 %v530, %v530
    %v540 = vsel %vm241, %v538, 0.0
    %v541 = vsel %vm241, %v539, 0.0
    %v542 = vadd.f32 %v540, %v541
    %543 = vadd.xlane.f32.xlu0 %v542
    %v544 = vpop.xlane.xlu0 %543
    %v545 = vmul.f32 %v544, 0.00390625
    %v546 = vmul.f32 %v537, %v537
    %v547 = vsub.f32 %v545, %v546
    %v548 = vmax.f32 %v547, 0.0
    %v549 = vsub.f32 %v528, %v537
    %v550 = vsub.f32 %v530, %v537
    %v551 = vadd.f32 %v548, 1e-05
    %v552 = vrsqrt.pop %v551
    %v553 = vmul.f32 %v549, %v552
    %v554 = vmul.f32 %v550, %v552
    %v555 = vadd.f32 %v553, %v75
    %v556 = vadd.f32 %v554, %v77
    %v557 = vmax.f32 %v555, 0.0
    %v558 = vmax.f32 %v556, 0.0
    %v561 = vcombine.low %v557, %v558
    %563 = vst [vmem:[#allocation10] sm:$0xff] %v561
    %s564 = scalar_lea.vmem [#allocation2], 8
    %v565 = vld [vmem:[%s564] sm:$0xff]
    %v567 = vcombine.high %v565, %v565
    %569 = vrot.lane.b32.xlu0 %v565, 17
    %v570 = vpop.permute.xlu0 %569
    %571 = vrot.lane.b32.xlu0 %v567, 17
    %v572 = vpop.permute.xlu0 %571
    %v573 = vsel %vm85, %v570, %v572
    %v574 = vsel %vm85, %v572, %v570
    %v575 = vmul.f32 %v574, %v91
    %v576 = vmul.f32 %v573, %v95
    %577 = vrot.lane.b32.xlu0 %v565, 16
    %v578 = vpop.permute.xlu0 %577
    %579 = vrot.lane.b32.xlu0 %v567, 16
    %v580 = vpop.permute.xlu0 %579
    %v581 = vsel %vm102, %v578, %v580
    %v582 = vsel %vm102, %v580, %v578
    %v583 = vmul.f32 %v582, %v108
    %v584 = vmul.f32 %v581, %v112
    %585 = vrot.lane.b32.xlu0 %v565, 15
    %v586 = vpop.permute.xlu0 %585
    %587 = vrot.lane.b32.xlu0 %v567, 15
    %v588 = vpop.permute.xlu0 %587
    %v589 = vsel %vm119, %v586, %v588
    %v590 = vsel %vm119, %v588, %v586
    %v591 = vmul.f32 %v590, %v125
    %v592 = vmul.f32 %v589, %v129
    %593 = vrot.lane.b32.xlu0 %v565, 1
    %v594 = vpop.permute.xlu0 %593
    %595 = vrot.lane.b32.xlu0 %v567, 1
    %v596 = vpop.permute.xlu0 %595
    %v597 = vsel %vm136, %v594, %v596
    %v598 = vsel %vm136, %v596, %v594
    %v599 = vmul.f32 %v598, %v142
    %v600 = vmul.f32 %v597, %v146
    %601 = vrot.lane.b32.xlu0 %v565, 127
    %v602 = vpop.permute.xlu0 %601
    %603 = vrot.lane.b32.xlu0 %v567, 127
    %v604 = vpop.permute.xlu0 %603
    %v605 = vsel %vm153, %v602, %v604
    %v606 = vsel %vm153, %v604, %v602
    %v607 = vmul.f32 %v605, %v159
    %v608 = vmul.f32 %v606, %v163
    %609 = vrot.lane.b32.xlu0 %v565, 113
    %v610 = vpop.permute.xlu0 %609
    %611 = vrot.lane.b32.xlu0 %v567, 113
    %v612 = vpop.permute.xlu0 %611
    %v613 = vsel %vm170, %v610, %v612
    %v614 = vsel %vm170, %v612, %v610
    %v615 = vmul.f32 %v613, %v176
    %v616 = vmul.f32 %v614, %v180
    %617 = vrot.lane.b32.xlu0 %v565, 112
    %v618 = vpop.permute.xlu0 %617
    %619 = vrot.lane.b32.xlu0 %v567, 112
    %v620 = vpop.permute.xlu0 %619
    %v621 = vsel %vm187, %v618, %v620
    %v622 = vsel %vm187, %v620, %v618
    %v623 = vmul.f32 %v621, %v193
    %v624 = vmul.f32 %v622, %v197
    %625 = vrot.lane.b32.xlu0 %v565, 111
    %v626 = vpop.permute.xlu0 %625
    %627 = vrot.lane.b32.xlu0 %v567, 111
    %v628 = vpop.permute.xlu0 %627
    %v629 = vsel %vm204, %v626, %v628
    %v630 = vsel %vm204, %v628, %v626
    %v631 = vmul.f32 %v629, %v210
    %v632 = vmul.f32 %v630, %v214
    %v635 = vrot.slane %v583, 4
    %v636 = vrot.slane %v584, 4
    %v641 = vrot.slane %v599, 4
    %v642 = vrot.slane %v600, 4
    %v647 = vrot.slane %v607, 4
    %v648 = vrot.slane %v608, 4
    %v653 = vrot.slane %v623, 4
    %v654 = vrot.slane %v624, 4
    %v657 = vsel %vm241, %v575, %v635
    %v658 = vsel %vm241, %v576, %v636
    %v659 = vsel %vm241, %v591, %v641
    %v660 = vsel %vm241, %v592, %v642
    %v661 = vsel %vm241, %v565, %v647
    %v662 = vsel %vm241, %v567, %v648
    %v663 = vsel %vm241, %v615, %v653
    %v664 = vsel %vm241, %v616, %v654
    %v666 = vsel %vm241, %v631, 0
    %v669 = vsel %vm241, %v632, 0
    %671 = vmatprep.subr.mxu0 0.0
    %672 = vmatpush1.msra.mxu0 0.0
    %673 = vmatprep.subr.mxu0 0.0
    %674 = vmatpush1.msra.mxu0 0.0
    %675 = vmatprep.subr.mxu0 0.0
    %676 = vmatpush1.msra.mxu0 0.0
    %677 = vmatprep.subr.mxu0 0.0
    %678 = vmatpush1.msra.mxu0 0.0
    %679 = vmatprep.subr.mxu0 0.0
    %680 = vmatpush1.msra.mxu0 0.0
    %681 = vmatprep.subr.mxu0 0.0
    %682 = vmatpush1.msra.mxu0 0.0
    %683 = vmatprep.subr.mxu0 0.0
    %684 = vmatpush1.msra.mxu0 0.0
    %685 = vmatprep.subr.mxu0 0.0
    %686 = vmatpush1.msra.mxu0 0.0
    %687 = vmatprep.subr.mxu0 0.0
    %688 = vmatpush1.msra.mxu0 0.0
    %689 = vmatprep.subr.mxu0 0.0
    %690 = vmatpush1.msra.mxu0 0.0
    %691 = vmatprep.subr.mxu0 0.0
    %692 = vmatpush1.msra.mxu0 0.0
    %693 = vmatprep.subr.mxu0 %v669
    %694 = vmatpush1.msra.mxu0 %v666
    %695 = vmatprep.subr.mxu0 %v664
    %696 = vmatpush1.msra.mxu0 %v663
    %697 = vmatprep.subr.mxu0 %v662
    %698 = vmatpush1.msra.mxu0 %v661
    %699 = vmatprep.subr.mxu0 %v660
    %700 = vmatpush1.msra.mxu0 %v659
    %701 = vmatprep.subr.mxu0 %v658
    %702 = vmatpush1.msra.mxu0 %v657
    %703 = vmatprep.subr.mxu0 0.0
    %704 = vmatpush2.msra.mxu0 0.0
    %705 = vmatprep.subr.mxu0 0.0
    %706 = vmatpush2.msra.mxu0 0.0
    %707 = vmatprep.subr.mxu0 0.0
    %708 = vmatpush2.msra.mxu0 0.0
    %709 = vmatprep.subr.mxu0 0.0
    %710 = vmatpush2.msra.mxu0 0.0
    %711 = vmatprep.subr.mxu0 0.0
    %712 = vmatpush2.msra.mxu0 0.0
    %713 = vmatprep.subr.mxu0 0.0
    %714 = vmatpush2.msra.mxu0 0.0
    %715 = vmatprep.subr.mxu0 0.0
    %716 = vmatpush2.msra.mxu0 0.0
    %717 = vmatprep.subr.mxu0 0.0
    %718 = vmatpush2.msra.mxu0 0.0
    %719 = vmatprep.subr.mxu0 0.0
    %720 = vmatpush2.msra.mxu0 0.0
    %721 = vmatprep.subr.mxu0 0.0
    %722 = vmatpush2.msra.mxu0 0.0
    %723 = vmatprep.subr.mxu0 0.0
    %724 = vmatpush2.msra.mxu0 0.0
    %725 = vmatprep.subr.mxu0 0.0
    %726 = vmatpush2.msra.mxu0 0.0
    %727 = vmatprep.subr.mxu0 0.0
    %728 = vmatpush2.msra.mxu0 0.0
    %729 = vmatprep.subr.mxu0 0.0
    %730 = vmatpush2.msra.mxu0 0.0
    %731 = vmatprep.subr.mxu0 0.0
    %732 = vmatpush2.msra.mxu0 0.0
    %733 = vmatprep.subr.mxu0 0.0
    %734 = vmatpush2.msra.mxu0 0.0
    %735 = vmatprep.mubr.f32.mxu0 0.0
    %736 = vmatmul.mubr.f32.gmra.mxu0 %v252
    %v737 = vpop.f32.mrf.mxu0
    %v738 = vadd.f32 0.0, %v737
    %v739 = vpop.f32.mrf.mxu0
    %v740 = vadd.f32 0.0, %v739
    %741 = vdwg.mxu0
    %v742 = vsel %vm241, %v738, 0.0
    %v743 = vsel %vm241, %v740, 0.0
    %v744 = vadd.f32 %v742, %v743
    %745 = vadd.xlane.f32.xlu0 %v744
    %v746 = vpop.xlane.xlu0 %745
    %v747 = vmul.f32 %v746, 0.00390625
    %v748 = vmul.f32 %v738, %v738
    %v749 = vmul.f32 %v740, %v740
    %v750 = vsel %vm241, %v748, 0.0
    %v751 = vsel %vm241, %v749, 0.0
    %v752 = vadd.f32 %v750, %v751
    %753 = vadd.xlane.f32.xlu0 %v752
    %v754 = vpop.xlane.xlu0 %753
    %v755 = vmul.f32 %v754, 0.00390625
    %v756 = vmul.f32 %v747, %v747
    %v757 = vsub.f32 %v755, %v756
    %v758 = vmax.f32 %v757, 0.0
    %v759 = vsub.f32 %v738, %v747
    %v760 = vsub.f32 %v740, %v747
    %v761 = vadd.f32 %v758, 1e-05
    %v762 = vrsqrt.pop %v761
    %v763 = vmul.f32 %v759, %v762
    %v764 = vmul.f32 %v760, %v762
    %v765 = vmax.f32 %v763, 0.0
    %v766 = vmax.f32 %v764, 0.0
    %767 = vrot.lane.b32.xlu0 %v765, 17
    %v768 = vpop.permute.xlu0 %767
    %769 = vrot.lane.b32.xlu0 %v766, 17
    %v770 = vpop.permute.xlu0 %769
    %v771 = vsel %vm85, %v768, %v770
    %v772 = vsel %vm85, %v770, %v768
    %v773 = vmul.f32 %v772, %v91
    %v774 = vmul.f32 %v771, %v95
    %775 = vrot.lane.b32.xlu0 %v765, 16
    %v776 = vpop.permute.xlu0 %775
    %777 = vrot.lane.b32.xlu0 %v766, 16
    %v778 = vpop.permute.xlu0 %777
    %v779 = vsel %vm102, %v776, %v778
    %v780 = vsel %vm102, %v778, %v776
    %v781 = vmul.f32 %v780, %v108
    %v782 = vmul.f32 %v779, %v112
    %783 = vrot.lane.b32.xlu0 %v765, 15
    %v784 = vpop.permute.xlu0 %783
    %785 = vrot.lane.b32.xlu0 %v766, 15
    %v786 = vpop.permute.xlu0 %785
    %v787 = vsel %vm119, %v784, %v786
    %v788 = vsel %vm119, %v786, %v784
    %v789 = vmul.f32 %v788, %v125
    %v790 = vmul.f32 %v787, %v129
    %791 = vrot.lane.b32.xlu0 %v765, 1
    %v792 = vpop.permute.xlu0 %791
    %793 = vrot.lane.b32.xlu0 %v766, 1
    %v794 = vpop.permute.xlu0 %793
    %v795 = vsel %vm136, %v792, %v794
    %v796 = vsel %vm136, %v794, %v792
    %v797 = vmul.f32 %v796, %v142
    %v798 = vmul.f32 %v795, %v146
    %799 = vrot.lane.b32.xlu0 %v765, 127
    %v800 = vpop.permute.xlu0 %799
    %801 = vrot.lane.b32.xlu0 %v766, 127
    %v802 = vpop.permute.xlu0 %801
    %v803 = vsel %vm153, %v800, %v802
    %v804 = vsel %vm153, %v802, %v800
    %v805 = vmul.f32 %v803, %v159
    %v806 = vmul.f32 %v804, %v163
    %807 = vrot.lane.b32.xlu0 %v765, 113
    %v808 = vpop.permute.xlu0 %807
    %809 = vrot.lane.b32.xlu0 %v766, 113
    %v810 = vpop.permute.xlu0 %809
    %v811 = vsel %vm170, %v808, %v810
    %v812 = vsel %vm170, %v810, %v808
    %v813 = vmul.f32 %v811, %v176
    %v814 = vmul.f32 %v812, %v180
    %815 = vrot.lane.b32.xlu0 %v765, 112
    %v816 = vpop.permute.xlu0 %815
    %817 = vrot.lane.b32.xlu0 %v766, 112
    %v818 = vpop.permute.xlu0 %817
    %v819 = vsel %vm187, %v816, %v818
    %v820 = vsel %vm187, %v818, %v816
    %v821 = vmul.f32 %v819, %v193
    %v822 = vmul.f32 %v820, %v197
    %823 = vrot.lane.b32.xlu0 %v765, 111
    %v824 = vpop.permute.xlu0 %823
    %825 = vrot.lane.b32.xlu0 %v766, 111
    %v826 = vpop.permute.xlu0 %825
    %v827 = vsel %vm204, %v824, %v826
    %v828 = vsel %vm204, %v826, %v824
    %v829 = vmul.f32 %v827, %v210
    %v830 = vmul.f32 %v828, %v214
    %v833 = vrot.slane %v781, 4
    %v834 = vrot.slane %v782, 4
    %v839 = vrot.slane %v797, 4
    %v840 = vrot.slane %v798, 4
    %v845 = vrot.slane %v805, 4
    %v846 = vrot.slane %v806, 4
    %v851 = vrot.slane %v821, 4
    %v852 = vrot.slane %v822, 4
    %v855 = vsel %vm241, %v773, %v833
    %v856 = vsel %vm241, %v774, %v834
    %v857 = vsel %vm241, %v789, %v839
    %v858 = vsel %vm241, %v790, %v840
    %v859 = vsel %vm241, %v765, %v845
    %v860 = vsel %vm241, %v766, %v846
    %v861 = vsel %vm241, %v813, %v851
    %v862 = vsel %vm241, %v814, %v852
    %v864 = vsel %vm241, %v829, 0
    %v867 = vsel %vm241, %v830, 0
    %869 = vmatprep.subr.mxu0 0.0
    %870 = vmatpush1.msra.mxu0 0.0
    %871 = vmatprep.subr.mxu0 0.0
    %872 = vmatpush1.msra.mxu0 0.0
    %873 = vmatprep.subr.mxu0 0.0
    %874 = vmatpush1.msra.mxu0 0.0
    %875 = vmatprep.subr.mxu0 0.0
    %876 = vmatpush1.msra.mxu0 0.0
    %877 = vmatprep.subr.mxu0 0.0
    %878 = vmatpush1.msra.mxu0 0.0
    %879 = vmatprep.subr.mxu0 0.0
    %880 = vmatpush1.msra.mxu0 0.0
    %881 = vmatprep.subr.mxu0 0.0
    %882 = vmatpush1.msra.mxu0 0.0
    %883 = vmatprep.subr.mxu0 0.0
    %884 = vmatpush1.msra.mxu0 0.0
    %885 = vmatprep.subr.mxu0 0.0
    %886 = vmatpush1.msra.mxu0 0.0
    %887 = vmatprep.subr.mxu0 0.0
    %888 = vmatpush1.msra.mxu0 0.0
    %889 = vmatprep.subr.mxu0 0.0
    %890 = vmatpush1.msra.mxu0 0.0
    %891 = vmatprep.subr.mxu0 %v867
    %892 = vmatpush1.msra.mxu0 %v864
    %893 = vmatprep.subr.mxu0 %v862
    %894 = vmatpush1.msra.mxu0 %v861
    %895 = vmatprep.subr.mxu0 %v860
    %896 = vmatpush1.msra.mxu0 %v859
    %897 = vmatprep.subr.mxu0 %v858
    %898 = vmatpush1.msra.mxu0 %v857
    %899 = vmatprep.subr.mxu0 %v856
    %900 = vmatpush1.msra.mxu0 %v855
    %901 = vmatprep.subr.mxu0 0.0
    %902 = vmatpush2.msra.mxu0 0.0
    %903 = vmatprep.subr.mxu0 0.0
    %904 = vmatpush2.msra.mxu0 0.0
    %905 = vmatprep.subr.mxu0 0.0
    %906 = vmatpush2.msra.mxu0 0.0
    %907 = vmatprep.subr.mxu0 0.0
    %908 = vmatpush2.msra.mxu0 0.0
    %909 = vmatprep.subr.mxu0 0.0
    %910 = vmatpush2.msra.mxu0 0.0
    %911 = vmatprep.subr.mxu0 0.0
    %912 = vmatpush2.msra.mxu0 0.0
    %913 = vmatprep.subr.mxu0 0.0
    %914 = vmatpush2.msra.mxu0 0.0
    %915 = vmatprep.subr.mxu0 0.0
    %916 = vmatpush2.msra.mxu0 0.0
    %917 = vmatprep.subr.mxu0 0.0
    %918 = vmatpush2.msra.mxu0 0.0
    %919 = vmatprep.subr.mxu0 0.0
    %920 = vmatpush2.msra.mxu0 0.0
    %921 = vmatprep.subr.mxu0 0.0
    %922 = vmatpush2.msra.mxu0 0.0
    %923 = vmatprep.subr.mxu0 0.0
    %924 = vmatpush2.msra.mxu0 0.0
    %925 = vmatprep.subr.mxu0 0.0
    %926 = vmatpush2.msra.mxu0 0.0
    %927 = vmatprep.subr.mxu0 0.0
    %928 = vmatpush2.msra.mxu0 0.0
    %929 = vmatprep.subr.mxu0 0.0
    %930 = vmatpush2.msra.mxu0 0.0
    %931 = vmatprep.subr.mxu0 0.0
    %932 = vmatpush2.msra.mxu0 0.0
    %933 = vmatprep.mubr.f32.mxu0 0.0
    %934 = vmatmul.mubr.f32.gmra.mxu0 %v453
    %v935 = vpop.f32.mrf.mxu0
    %v936 = vadd.f32 0.0, %v935
    %v937 = vpop.f32.mrf.mxu0
    %v938 = vadd.f32 0.0, %v937
    %939 = vdwg.mxu0
    %v940 = vsel %vm241, %v936, 0.0
    %v941 = vsel %vm241, %v938, 0.0
    %v942 = vadd.f32 %v940, %v941
    %943 = vadd.xlane.f32.xlu0 %v942
    %v944 = vpop.xlane.xlu0 %943
    %v945 = vmul.f32 %v944, 0.00390625
    %v946 = vmul.f32 %v936, %v936
    %v947 = vmul.f32 %v938, %v938
    %v948 = vsel %vm241, %v946, 0.0
    %v949 = vsel %vm241, %v947, 0.0
    %v950 = vadd.f32 %v948, %v949
    %951 = vadd.xlane.f32.xlu0 %v950
    %v952 = vpop.xlane.xlu0 %951
    %v953 = vmul.f32 %v952, 0.00390625
    %v954 = vmul.f32 %v945, %v945
    %v955 = vsub.f32 %v953, %v954
    %v956 = vmax.f32 %v955, 0.0
    %v957 = vsub.f32 %v936, %v945
    %v958 = vsub.f32 %v938, %v945
    %v959 = vadd.f32 %v956, 1e-05
    %v960 = vrsqrt.pop %v959
    %v961 = vmul.f32 %v957, %v960
    %v962 = vmul.f32 %v958, %v960
    %v963 = vadd.f32 %v961, %v565
    %v964 = vadd.f32 %v962, %v567
    %v965 = vmax.f32 %v963, 0.0
    %v966 = vmax.f32 %v964, 0.0
    %v969 = vcombine.low %v965, %v966
    %s971 = scalar_lea.vmem [#allocation10], 8
    %972 = vst [vmem:[%s971] sm:$0xff] %v969
    // Predicated region
    $region34: #{tpu_custom_call.1} parent=1 // pred_check
      _
    $region35: #{tpu_custom_call.1} parent=1 // pred_check_branch
      %974 = sbr.rel (0) target = $region37
    $region36: #{tpu_custom_call.1} parent=1 // pred_region
      %s976 = ssub.s32 256, 256
      %977 = vsyncadd [#allocation4], %s976
      %s978 = sshll.u32 [#allocation10], 4
      %s979 = int_to_ptr.vmem [resolvable:$true] %s978
      %984 = dma.vmem_to_hbm [thread:$0]  %s979, 256, %s4, [#allocation4], 128, 128, 8
    $region37: #{tpu_custom_call.1} parent=1 // pred_fallthru
      _
    // Predicated region
    $region38: #{tpu_custom_call.1} parent=1 // pred_check
      _
    $region39: #{tpu_custom_call.1} parent=1 // pred_check_branch
      %986 = sbr.rel (0) target = $region41
    $region40: #{tpu_custom_call.1} parent=1 // pred_region
      %987 = dma.done [#allocation4], 256
    $region41: #{tpu_custom_call.1} parent=1 // pred_fallthru
      _
    %988 = vsyncpa [#allocation3], 1
    %989 = vsyncpa [#allocation6], 1
    %990 = vsyncpa [#allocation9], 1
    %991 = vsyncpa [#allocation4], 1

</llo_original>
